<compile_context>
chip_gen: v7x
topology: tpu7x:2x2x1
jax: 0.10.0
libtpu: 0.0.40
codegen_flags: <defaults>
</compile_context>

<pallas_src>
import numpy as np
import jax
import jax.numpy as jnp
from jax.experimental import pallas as pl
from jax.experimental.pallas import tpu as pltpu


_LANE = 128
_SUBLANE = 8
_MAX_TN = 2048  # cap on output-tile width (keeps double-buffered weight tiles small)


def _round_up(x, m):
    return ((x + m - 1) // m) * m


def _pick_tn(out_dim_p):
    """Largest multiple of 128 that divides out_dim_p and is <= _MAX_TN."""
    cap = min(out_dim_p, _MAX_TN)
    for t in range(cap, 0, -_LANE):
        if out_dim_p % t == 0:
            return t
    return _LANE


def _shape_pred_kernel(feat_ref, wt_ref, out_ref):
    # One MXU matmul per output tile: (B_pad, n) @ (n, TN) -> (B_pad, TN).
    # Bias is identically zero in the module (bias.fill_(0.0)), so it is omitted.
    out_ref[...] = jnp.dot(
        feat_ref[...], wt_ref[...], preferred_element_type=jnp.float32
    ).astype(out_ref.dtype)


def build_params(nz_feat, num_verts, n_shape_feat, shapedirs, weight_dtype=jnp.float32):
    """Replicates ShapePredictor.__init__ weight surgery, storing only the dense,
    pre-transposed effective weight.

    The module sets W = A with A[:, :n] = shapedirs.T[:, :n] (rest zeros) and
    bias = 0, hence  feat @ W.T == feat[:, :n] @ shapedirs[:n, :].
    We keep shapedirs[:n, :] directly in (K, N) lane-dense layout: no per-call
    transpose, ~nz_feat/n fewer weight bytes streamed, and no bias input.
    weight_dtype=jnp.bfloat16 would further halve streamed bytes on v6e/v7x.
    """
    out_dim = num_verts * 3
    n = int(min(shapedirs.shape[0], n_shape_feat))
    out_dim_p = _round_up(out_dim, _LANE)  # lane-pad once at build time (free at runtime)
    wt = np.zeros((n, out_dim_p), dtype=np.float32)
    wt[:, :out_dim] = np.asarray(shapedirs)[:n, :out_dim]
    return jnp.asarray(wt, dtype=weight_dtype), n


def shape_predictor_forward(feat, wt_eff, num_verts):
    """feat: (batch, nz_feat) -> delta_v: (batch, num_verts, 3)."""
    batch, nz_feat = feat.shape
    n, out_dim_p = wt_eff.shape
    out_dim = num_verts * 3
    assert n <= nz_feat

    # Only the first n feature columns multiply nonzero weights.
    feat_eff = feat[:, :n].astype(wt_eff.dtype)
    # Pad batch to a full sublane group so output stores are unmasked.
    b_pad = _round_up(max(batch, 1), _SUBLANE)
    if b_pad != batch:
        feat_eff = jnp.pad(feat_eff, ((0, b_pad - batch), (0, 0)))

    tn = _pick_tn(out_dim_p)
    grid = (out_dim_p // tn,)

    out_padded = pl.pallas_call(
        _shape_pred_kernel,
        out_shape=jax.ShapeDtypeStruct((b_pad, out_dim_p), feat.dtype),
        grid=grid,
        in_specs=[
            pl.BlockSpec((b_pad, n), lambda j: (0, 0)),  # activations: resident
            pl.BlockSpec((n, tn), lambda j: (0, j)),     # weight: streamed per N tile
        ],
        out_specs=pl.BlockSpec((b_pad, tn), lambda j: (0, j)),
        compiler_params=pltpu.CompilerParams(
            dimension_semantics=("parallel",)),          # N tiles are independent
    )(feat_eff, wt_eff)

    # delta_v.view(batch, -1, 3)
    delta_flat = out_padded[:batch, :out_dim]
    return delta_flat.reshape(batch, num_verts, 3)


if __name__ == "__main__":
    # Small, consistent shapes: batch=2, nz_feat=32, num_verts=128 (-> out_dim=384).
    batch = 2
    nz_feat = 32
    num_verts = 128
    n_shape_dirs = 10        # shapedirs: (n_dirs, num_verts*3)
    n_shape_feat = nz_feat   # cfg['MODEL']['N_SHAPE_FEAT'] must equal nz_feat

    key = jax.random.PRNGKey(0)
    k_feat, k_dirs = jax.random.split(key)
    feat = jax.random.normal(k_feat, (batch, nz_feat), dtype=jnp.float32)
    shapedirs = jax.random.normal(
        k_dirs, (n_shape_dirs, num_verts * 3), dtype=jnp.float32)

    wt_eff, n = build_params(nz_feat, num_verts, n_shape_feat, shapedirs)

    # TODO(synk): self.fc (nb.fc batch-norm feature head) is defined in __init__
    # but never used in forward(), so it is intentionally omitted.

    delta_v = shape_predictor_forward(feat, wt_eff, num_verts)
    delta_v = jax.block_until_ready(delta_v)

    # Reference: the full zero-padded Linear, exactly as the PyTorch module builds it.
    out_dim = num_verts * 3
    A = np.zeros((out_dim, n_shape_feat), dtype=np.float32)
    A[:, :n] = np.asarray(shapedirs).T[:, :n]
    ref = (np.asarray(feat) @ A.T).reshape(batch, num_verts, 3)

    np.testing.assert_allclose(np.asarray(delta_v), ref, rtol=1e-5, atol=1e-5)
    assert delta_v.shape == (batch, num_verts, 3)
    print("KERNEL_OK")
</pallas_src>

<mosaic_0001>
module attributes {stable_mosaic.version = 11 : i64} {
  func.func @_shape_pred_kernel(%arg0: i32, %arg1: memref<8x10xf32, #tpu.memory_space<vmem>>, %arg2: memref<10x384xf32, #tpu.memory_space<vmem>>, %arg3: memref<8x384xf32, #tpu.memory_space<vmem>>) attributes {dimension_semantics = [#tpu.dimension_semantics<parallel>], iteration_bounds = array<i64: 1>, scalar_prefetch = 0 : i64, scratch_operands = 0 : i64, tpu.core_type = #tpu.core_type<tc>, window_params = [{pipeline_mode = #tpu.pipeline_mode<synchronous>, transform_indices = @transform_0, window_bounds = array<i64: 8, 10>}, {transform_indices = @transform_1, window_bounds = array<i64: 10, 384>}, {transform_indices = @transform_2, window_bounds = array<i64: 8, 384>}]} {
    %c0 = arith.constant 0 : index
    %c0_0 = arith.constant 0 : index
    %0 = vector.load %arg1[%c0, %c0_0] : memref<8x10xf32, #tpu.memory_space<vmem>>, vector<8x10xf32>
    %c0_1 = arith.constant 0 : index
    %c0_2 = arith.constant 0 : index
    %1 = vector.load %arg2[%c0_1, %c0_2] : memref<10x384xf32, #tpu.memory_space<vmem>>, vector<10x384xf32>
    %cst = arith.constant dense<0.000000e+00> : vector<8x384xf32>
    %2 = tpu.matmul %0, %1, %cst {dimension_numbers = #tpu.dot_dimension_numbers<[1], [0], [0], [1], [0, 0, 1, 1], [], []>} : vector<8x10xf32>, vector<10x384xf32>, vector<8x384xf32> -> vector<8x384xf32>
    %c0_3 = arith.constant 0 : index
    %c0_4 = arith.constant 0 : index
    %3 = vector.load %arg3[%c0_3, %c0_4] : memref<8x384xf32, #tpu.memory_space<vmem>>, vector<8x384xf32>
    tpu.vector_store %arg3[%c0_3, %c0_4], %2 {strides = array<i32>} : memref<8x384xf32, #tpu.memory_space<vmem>>, vector<8x384xf32>,
    return
  }
  func.func @transform_0(%arg0: i32) -> (i32, i32) {
    %c0_i32 = arith.constant 0 : i32
    %c0_i32_0 = arith.constant 0 : i32
    %c0_i32_1 = arith.constant 0 : i32
    return %c0_i32, %c0_i32_0 : i32, i32
  }
  func.func @transform_1(%arg0: i32) -> (i32, i32) {
    %c0_i32 = arith.constant 0 : i32
    %c0_i32_0 = arith.constant 0 : i32
    return %c0_i32, %arg0 : i32, i32
  }
  func.func @transform_2(%arg0: i32) -> (i32, i32) {
    %c0_i32 = arith.constant 0 : i32
    %c0_i32_0 = arith.constant 0 : i32
    return %c0_i32, %arg0 : i32, i32
  }
}

</mosaic_0001>

<llo_original>
// kernel: tpu_custom_call.1
$region0: #{tpu_custom_call.1}
  #allocation0 [shape = 'u32[]', space=smem, size = 0x4, offset = 0x4, fixed_abs, tag = 'smem constant byte address 0x4 - core index']
  #allocation1 [shape = 'u32[144,128]{1,0:T(1,128)}', space=vmem, size = 0x12000, scoped, tag = 'internal scratch']
  %s0 = inlined_call_operand.hbm [shape: f32[8,10], index: 0, kind: input, shape index: {}]
  %s1 = inlined_call_operand.hbm [shape: f32[10,384], index: 1, kind: input, shape index: {}]
  %s2 = inlined_call_operand.hbm [shape: f32[8,384], index: 2, kind: output, shape index: {}]
  %s3 = sld [smem:[#allocation0]]
  $region26: #{tpu_custom_call.1} parent=0
    _
  %s5 = ssub.s32 1, %s3
  %s6 = scalar_select 0, %s5, %s3
  $region1: #{tpu_custom_call.1} parent=0
    #allocation2 [shape = 'u8[4096]{0}', space=vmem, size = 0x1000, scoped, tag = 'input window, operand 0, single buffered']
    #allocation3 [shape = 's32[1]{0}', space=sflag, size = 0x4, scoped, tag = 'scoped memory for tpu_custom_call.1']
    #allocation4 [shape = 's32[1]{0}', space=sflag, size = 0x4, scoped, tag = 'scoped memory for tpu_custom_call.1']
    #allocation5 [shape = 'u8[24576]{0}', space=vmem, size = 0x6000, scoped, tag = 'input window, operand 1, single buffered']
    #allocation6 [shape = 's32[1]{0}', space=sflag, size = 0x4, scoped, tag = 'scoped memory for tpu_custom_call.1']
    #allocation7 [shape = 'u8[12288]{0}', space=vmem, size = 0x3000, scoped, tag = 'output window, operand 0, single buffered']
    %7 = vsyncpa [#allocation3], 0
    %8 = vsyncpa [#allocation6], 0
    %9 = vsyncpa [#allocation4], 0
    // Predicated region
    $region2: #{tpu_custom_call.1} parent=1 // pred_check
      _
    $region3: #{tpu_custom_call.1} parent=1 // pred_check_branch
      %11 = sbr.rel (0) target = $region5
    $region4: #{tpu_custom_call.1} parent=1 // pred_region
      %s13 = ssub.s32 128, 128
      %14 = vsyncadd [#allocation3], %s13
      %s16 = sshll.u32 [#allocation2], 4
      %s17 = int_to_ptr.vmem [resolvable:$true] %s16
      %19 = dma.hbm_to_vmem [thread:$0]  %s0, 128, %s17, [#allocation3]
    $region5: #{tpu_custom_call.1} parent=1 // pred_fallthru
      _
    // Predicated region
    $region6: #{tpu_custom_call.1} parent=1 // pred_check
      _
    $region7: #{tpu_custom_call.1} parent=1 // pred_check_branch
      %21 = sbr.rel (0) target = $region9
    $region8: #{tpu_custom_call.1} parent=1 // pred_region
      %s23 = ssub.s32 768, 768
      %24 = vsyncadd [#allocation6], %s23
      %s25 = sshll.u32 [#allocation5], 4
      %s26 = int_to_ptr.vmem [resolvable:$true] %s25
      %31 = dma.hbm_to_vmem [thread:$0]  %s1, 768, %s26, [#allocation6], 384, 384, 24
    $region9: #{tpu_custom_call.1} parent=1 // pred_fallthru
      _
    // Predicated region
    $region10: #{tpu_custom_call.1} parent=1 // pred_check
      _
    $region11: #{tpu_custom_call.1} parent=1 // pred_check_branch
      %33 = sbr.rel (0) target = $region13
    $region12: #{tpu_custom_call.1} parent=1 // pred_region
      %34 = dma.done [#allocation3], 128
    $region13: #{tpu_custom_call.1} parent=1 // pred_fallthru
      _
    // Predicated region
    $region14: #{tpu_custom_call.1} parent=1 // pred_check
      _
    $region15: #{tpu_custom_call.1} parent=1 // pred_check_branch
      %36 = sbr.rel (0) target = $region17
    $region16: #{tpu_custom_call.1} parent=1 // pred_region
      %37 = dma.done [#allocation6], 768
    $region17: #{tpu_custom_call.1} parent=1 // pred_fallthru
      _
    %v38 = vld [vmem:[#allocation2] sm:$0xff]
    %v39 = vld [vmem:[#allocation5] sm:$0xff]
    %v40 = vld [vmem:[#allocation5 + $0x8] sm:$0xff]
    %v41 = vld [vmem:[#allocation5 + $0x10] sm:$0xff]
    %v42 = vld [vmem:[#allocation5 + $0x18] sm:$0x3]
    %v43 = vld [vmem:[#allocation5 + $0x20] sm:$0x3]
    %v44 = vld [vmem:[#allocation5 + $0x28] sm:$0x3]
    %vm45 = vcmask 80896
    %v47 = vsel %vm45, %v38, 0
    %vm49 = vcmask 1041408
    %v51 = vsel %vm49, %v42, 0
    %v54 = vsel %vm49, %v43, 0
    %v57 = vsel %vm49, %v44, 0
    %59 = vmatprep.subr.mxu0 %v40
    %60 = vmatpush1.msra.mxu0 %v39
    %61 = vmatprep.subr.mxu0 %v54
    %62 = vmatpush1.msra.mxu0 %v51
    %63 = vmatprep.subr.mxu0 0.0
    %64 = vmatpush1.msra.mxu0 0.0
    %65 = vmatprep.subr.mxu0 0.0
    %66 = vmatpush1.msra.mxu0 0.0
    %67 = vmatprep.subr.mxu0 0.0
    %68 = vmatpush1.msra.mxu0 0.0
    %69 = vmatprep.subr.mxu0 0.0
    %70 = vmatpush1.msra.mxu0 0.0
    %71 = vmatprep.subr.mxu0 0.0
    %72 = vmatpush1.msra.mxu0 0.0
    %73 = vmatprep.subr.mxu0 0.0
    %74 = vmatpush1.msra.mxu0 0.0
    %75 = vmatprep.subr.mxu0 0.0
    %76 = vmatpush1.msra.mxu0 0.0
    %77 = vmatprep.subr.mxu0 0.0
    %78 = vmatpush1.msra.mxu0 0.0
    %79 = vmatprep.subr.mxu0 0.0
    %80 = vmatpush1.msra.mxu0 0.0
    %81 = vmatprep.subr.mxu0 0.0
    %82 = vmatpush1.msra.mxu0 0.0
    %83 = vmatprep.subr.mxu0 0.0
    %84 = vmatpush1.msra.mxu0 0.0
    %85 = vmatprep.subr.mxu0 0.0
    %86 = vmatpush1.msra.mxu0 0.0
    %87 = vmatprep.subr.mxu0 0.0
    %88 = vmatpush1.msra.mxu0 0.0
    %89 = vmatprep.subr.mxu0 0.0
    %90 = vmatpush1.msra.mxu0 0.0
    %91 = vmatprep.subr.mxu0 0.0
    %92 = vmatpush1.msra.mxu0 0.0
    %93 = vmatprep.subr.mxu0 0.0
    %94 = vmatpush1.msra.mxu0 0.0
    %95 = vmatprep.subr.mxu0 0.0
    %96 = vmatpush1.msra.mxu0 0.0
    %97 = vmatprep.subr.mxu0 0.0
    %98 = vmatpush1.msra.mxu0 0.0
    %99 = vmatprep.subr.mxu0 0.0
    %100 = vmatpush1.msra.mxu0 0.0
    %101 = vmatprep.subr.mxu0 0.0
    %102 = vmatpush1.msra.mxu0 0.0
    %103 = vmatprep.subr.mxu0 0.0
    %104 = vmatpush1.msra.mxu0 0.0
    %105 = vmatprep.subr.mxu0 0.0
    %106 = vmatpush1.msra.mxu0 0.0
    %107 = vmatprep.subr.mxu0 0.0
    %108 = vmatpush1.msra.mxu0 0.0
    %109 = vmatprep.subr.mxu0 0.0
    %110 = vmatpush1.msra.mxu0 0.0
    %111 = vmatprep.subr.mxu0 0.0
    %112 = vmatpush1.msra.mxu0 0.0
    %113 = vmatprep.subr.mxu0 0.0
    %114 = vmatpush1.msra.mxu0 0.0
    %115 = vmatprep.subr.mxu0 0.0
    %116 = vmatpush1.msra.mxu0 0.0
    %117 = vmatprep.subr.mxu0 0.0
    %118 = vmatpush1.msra.mxu0 0.0
    %119 = vmatprep.subr.mxu0 0.0
    %120 = vmatpush1.msra.mxu0 0.0
    %121 = vmatprep.subr.mxu0 0.0
    %122 = vmatpush1.msra.mxu0 0.0
    %123 = vmatprep.mubr.f32.mxu0 0.0
    %124 = vmatmul.mubr.f32.gmra.mrb[0].mxu0 %v47
    %v125 = vpop.f32.mrb[0].mxu0
    %v126 = vadd.f32 0.0, %v125
    %v127 = vpop.f32.mrb[0].mxu0
    %v128 = vadd.f32 0.0, %v127
    %129 = vdwg.mxu0
    %130 = vmatprep.subr.mxu0 0.0
    %131 = vmatpush1.msra.mxu0 %v41
    %132 = vmatprep.subr.mxu0 0.0
    %133 = vmatpush1.msra.mxu0 %v57
    %134 = vmatprep.subr.mxu0 0.0
    %135 = vmatpush1.msra.mxu0 0.0
    %136 = vmatprep.subr.mxu0 0.0
    %137 = vmatpush1.msra.mxu0 0.0
    %138 = vmatprep.subr.mxu0 0.0
    %139 = vmatpush1.msra.mxu0 0.0
    %140 = vmatprep.subr.mxu0 0.0
    %141 = vmatpush1.msra.mxu0 0.0
    %142 = vmatprep.subr.mxu0 0.0
    %143 = vmatpush1.msra.mxu0 0.0
    %144 = vmatprep.subr.mxu0 0.0
    %145 = vmatpush1.msra.mxu0 0.0
    %146 = vmatprep.subr.mxu0 0.0
    %147 = vmatpush1.msra.mxu0 0.0
    %148 = vmatprep.subr.mxu0 0.0
    %149 = vmatpush1.msra.mxu0 0.0
    %150 = vmatprep.subr.mxu0 0.0
    %151 = vmatpush1.msra.mxu0 0.0
    %152 = vmatprep.subr.mxu0 0.0
    %153 = vmatpush1.msra.mxu0 0.0
    %154 = vmatprep.subr.mxu0 0.0
    %155 = vmatpush1.msra.mxu0 0.0
    %156 = vmatprep.subr.mxu0 0.0
    %157 = vmatpush1.msra.mxu0 0.0
    %158 = vmatprep.subr.mxu0 0.0
    %159 = vmatpush1.msra.mxu0 0.0
    %160 = vmatprep.subr.mxu0 0.0
    %161 = vmatpush1.msra.mxu0 0.0
    %162 = vmatprep.subr.mxu0 0.0
    %163 = vmatpush1.msra.mxu0 0.0
    %164 = vmatprep.subr.mxu0 0.0
    %165 = vmatpush1.msra.mxu0 0.0
    %166 = vmatprep.subr.mxu0 0.0
    %167 = vmatpush1.msra.mxu0 0.0
    %168 = vmatprep.subr.mxu0 0.0
    %169 = vmatpush1.msra.mxu0 0.0
    %170 = vmatprep.subr.mxu0 0.0
    %171 = vmatpush1.msra.mxu0 0.0
    %172 = vmatprep.subr.mxu0 0.0
    %173 = vmatpush1.msra.mxu0 0.0
    %174 = vmatprep.subr.mxu0 0.0
    %175 = vmatpush1.msra.mxu0 0.0
    %176 = vmatprep.subr.mxu0 0.0
    %177 = vmatpush1.msra.mxu0 0.0
    %178 = vmatprep.subr.mxu0 0.0
    %179 = vmatpush1.msra.mxu0 0.0
    %180 = vmatprep.subr.mxu0 0.0
    %181 = vmatpush1.msra.mxu0 0.0
    %182 = vmatprep.subr.mxu0 0.0
    %183 = vmatpush1.msra.mxu0 0.0
    %184 = vmatprep.subr.mxu0 0.0
    %185 = vmatpush1.msra.mxu0 0.0
    %186 = vmatprep.subr.mxu0 0.0
    %187 = vmatpush1.msra.mxu0 0.0
    %188 = vmatprep.subr.mxu0 0.0
    %189 = vmatpush1.msra.mxu0 0.0
    %190 = vmatprep.subr.mxu0 0.0
    %191 = vmatpush1.msra.mxu0 0.0
    %192 = vmatprep.subr.mxu0 0.0
    %193 = vmatpush1.msra.mxu0 0.0
    %194 = vmatprep.mubr.f32.mxu0 0.0
    %195 = vmatmul.mubr.f32.gmra.mrb[0].mxu0 %v47
    %v196 = vpop.f32.mrb[0].mxu0
    %v197 = vadd.f32 0.0, %v196
    %v198 = vpop.f32.mrb[0].mxu0
    %199 = vdwg.mxu0
    %200 = vst [vmem:[#allocation7] sm:$0xff] %v126
    %201 = vst [vmem:[#allocation7 + $0x8] sm:$0xff] %v128
    %202 = vst [vmem:[#allocation7 + $0x10] sm:$0xff] %v197
    // Predicated region
    $region18: #{tpu_custom_call.1} parent=1 // pred_check
      _
    $region19: #{tpu_custom_call.1} parent=1 // pred_check_branch
      %204 = sbr.rel (0) target = $region21
    $region20: #{tpu_custom_call.1} parent=1 // pred_region
      %s206 = ssub.s32 384, 384
      %207 = vsyncadd [#allocation4], %s206
      %s209 = sshll.u32 [#allocation7], 4
      %s210 = int_to_ptr.vmem [resolvable:$true] %s209
      %212 = dma.vmem_to_hbm [thread:$0]  %s210, 384, %s2, [#allocation4]
    $region21: #{tpu_custom_call.1} parent=1 // pred_fallthru
      _
    // Predicated region
    $region22: #{tpu_custom_call.1} parent=1 // pred_check
      _
    $region23: #{tpu_custom_call.1} parent=1 // pred_check_branch
      %214 = sbr.rel (0) target = $region25
    $region24: #{tpu_custom_call.1} parent=1 // pred_region
      %215 = dma.done [#allocation4], 384
    $region25: #{tpu_custom_call.1} parent=1 // pred_fallthru
      _
    %216 = vsyncpa [#allocation3], 1
    %217 = vsyncpa [#allocation6], 1
    %218 = vsyncpa [#allocation4], 1

</llo_original>
